<compile_context>
chip_gen: v7x
topology: tpu7x:2x2x1
jax: 0.10.0
libtpu: 0.0.40
codegen_flags: <defaults>
</compile_context>

<pallas_src>
import jax
import jax.numpy as jnp
from jax import lax
from jax.experimental import pallas as pl
from jax.experimental.pallas import tpu as pltpu

HIDDEN = 32
REDUCTION = 4
DOWN = HIDDEN // REDUCTION
PACK = 4                      # tokens packed per 128-lane row
PACKED_H = PACK * HIDDEN      # 128 lanes
WIDE = 2 * PACKED_H           # 256: [dense | dense@seg] fused rhs
LN_EPS_FINAL = 1e-12          # config.layer_norm_eps
LN_EPS_ADAPTER = 1e-5         # nn.LayerNorm default inside AdapterController

# TODO(synk): nn.Dropout is stochastic in training mode; we reproduce eval-mode
# (identity) semantics, i.e. the deterministic forward pass.


def _cdiv(a, b):
    return -(-a // b)


def _round_up(a, b):
    return _cdiv(a, b) * b


def roberta_self_output_kernel(hs_ref, inp_ref, wd_ref, wdn_ref, wup_ref,
                               seg_ref, vec_ref, out_ref):
    f32 = jnp.float32
    x = hs_ref[...]                           # (rb, 128): 4 tokens per row
    inp = inp_ref[...].astype(f32)            # (rb, 128)
    seg = seg_ref[...]                        # (128, 128) bf16 per-token mean matrix
    vecs = vec_ref[...]                       # (16, 128) f32 bias / gamma / beta rows

    bd, mu_bd = vecs[0:1], vecs[1:2]
    bdn, bup = vecs[2:3], vecs[3:4]
    pre_g, pre_b = vecs[4:5], vecs[5:6]
    post_g, post_b = vecs[6:7], vecs[7:8]
    ln_g, ln_b = vecs[8:9], vecs[9:10]

    def mm(a, w):
        # guaranteed single-pass bf16 MXU matmul, f32 accumulate
        return jnp.dot(a.astype(jnp.bfloat16), w, preferred_element_type=f32)

    def seg_mean(v):
        # per-32-lane-segment (per-token) mean, broadcast back over the segment
        return mm(v, seg)

    # self.dense(hidden_states); the pre-LN per-token mean rides along in the
    # extra 128 rhs columns (Wd @ seg) of the same MXU pass.
    f1 = mm(x, wd_ref[...])                   # (rb, 256)
    h = f1[:, :PACKED_H] + bd                 # dense output (+ bias)
    mu1 = f1[:, PACKED_H:] + mu_bd            # per-token mean of h

    # self.dropout(h) -> identity (eval mode)

    # AdapterController: pre-LN -> down -> relu -> up -> post-LN -> + residual
    c1 = h - mu1
    z = c1 * lax.rsqrt(seg_mean(c1 * c1) + LN_EPS_ADAPTER) * pre_g + pre_b

    d = jnp.maximum(mm(z, wdn_ref[...]) + bdn, 0.0)       # nonlinearity = "relu"
    u = mm(d, wup_ref[...]) + bup

    c2 = u - seg_mean(u)
    u_ln = c2 * lax.rsqrt(seg_mean(c2 * c2) + LN_EPS_ADAPTER) * post_g + post_b

    # self.LayerNorm(adapter_out + dense_out + input_tensor)
    t = u_ln + h + inp
    c3 = t - seg_mean(t)
    y = c3 * lax.rsqrt(seg_mean(c3 * c3) + LN_EPS_FINAL) * ln_g + ln_b
    out_ref[...] = y.astype(out_ref.dtype)


def _pack_params(params):
    """Build lane-dense (4-token block-diagonal) parameters once on the host."""
    (wd, bd, wdn, bdn, wup, bup,
     pre_g, pre_b, post_g, post_b, ln_g, ln_b) = params
    f32 = jnp.float32
    bf16 = jnp.bfloat16
    eye = jnp.eye(PACK, dtype=f32)
    seg = jnp.kron(eye, jnp.full((HIDDEN, HIDDEN), 1.0 / HIDDEN, f32))   # (128,128)

    wd_bd = jnp.kron(eye, wd.astype(f32))                                # (128,128)
    wd_wide = jnp.concatenate([wd_bd, wd_bd @ seg], axis=1)              # (128,256)
    wdn_bd = jnp.kron(eye, jnp.pad(wdn.astype(f32),
                                   ((0, 0), (0, HIDDEN - DOWN))))        # (128,128)
    wup_bd = jnp.kron(eye, jnp.pad(wup.astype(f32),
                                   ((0, HIDDEN - DOWN), (0, 0))))        # (128,128)

    def tile(v):  # (1, HIDDEN) -> (1, 128)
        return jnp.tile(v.astype(f32), (1, PACK))

    bd_t = tile(bd)
    vecs = jnp.concatenate(
        [bd_t, bd_t @ seg,
         tile(jnp.pad(bdn.astype(f32), ((0, 0), (0, HIDDEN - DOWN)))),
         tile(bup),
         tile(pre_g), tile(pre_b), tile(post_g), tile(post_b),
         tile(ln_g), tile(ln_b)], axis=0)                                # (10,128)
    vecs = jnp.pad(vecs, ((0, 16 - vecs.shape[0]), (0, 0)))              # (16,128)
    return (wd_wide.astype(bf16), wdn_bd.astype(bf16), wup_bd.astype(bf16),
            seg.astype(bf16), vecs)


def roberta_self_output(hidden_states, input_tensor, params, *, row_block=1024):
    B, S, H = hidden_states.shape
    assert H == HIDDEN
    N = B * S
    dtype = hidden_states.dtype

    # Pack 4 tokens per 128-lane row; pad to a whole number of row blocks.
    R = _cdiv(N, PACK)
    nsteps = _cdiv(R, row_block)
    if R >= 16:
        nsteps = max(nsteps, 2)   # keep >=2 grid steps so v7x's 2 TCs both get work
    rb = _round_up(_cdiv(R, nsteps), 8)
    R_pad = _round_up(R, rb)
    N_pad = R_pad * PACK
    grid = (R_pad // rb,)

    def pack(x):
        x2 = x.reshape(N, H)
        if N_pad != N:
            x2 = jnp.pad(x2, ((0, N_pad - N), (0, 0)))
        return x2.reshape(R_pad, PACKED_H)

    hs_p = pack(hidden_states)
    in_p = pack(input_tensor)
    wd_wide, wdn_bd, wup_bd, seg, vecs = _pack_params(params)

    row_spec = pl.BlockSpec((rb, PACKED_H), lambda i: (i, 0))

    def full_spec(a):
        return pl.BlockSpec(a.shape, lambda i: (0, 0))

    itemsize = jnp.dtype(dtype).itemsize
    weight_bytes = sum(int(a.size) * a.dtype.itemsize
                       for a in (wd_wide, wdn_bd, wup_bd, seg, vecs))
    cost = pl.CostEstimate(
        flops=2 * R_pad * PACKED_H * (WIDE + 7 * PACKED_H),   # 8 matmuls / packed row
        transcendentals=3 * N_pad,                            # 3 rsqrt per token
        bytes_accessed=3 * N_pad * H * itemsize + weight_bytes,
    )

    out = pl.pallas_call(
        roberta_self_output_kernel,
        out_shape=jax.ShapeDtypeStruct((R_pad, PACKED_H), dtype),
        grid_spec=pltpu.PrefetchScalarGridSpec(
            num_scalar_prefetch=0,
            grid=grid,
            in_specs=[row_spec, row_spec,
                      full_spec(wd_wide), full_spec(wdn_bd), full_spec(wup_bd),
                      full_spec(seg), full_spec(vecs)],
            out_specs=row_spec,
        ),
        compiler_params=pltpu.CompilerParams(
            dimension_semantics=("parallel",)),
        cost_estimate=cost,
    )(hs_p, in_p, wd_wide, wdn_bd, wup_bd, seg, vecs)

    out = out.reshape(N_pad, H)
    if N_pad != N:
        out = out[:N]
    return out.reshape(B, S, H)


def init_params(key):
    ks = jax.random.split(key, 6)
    # PyTorch Linear weights are (out, in); we store the transposed (in, out)
    # layout so the math is x @ W + b (== PyTorch x @ W.T + b).
    wd = 0.02 * jax.random.normal(ks[0], (HIDDEN, HIDDEN), jnp.float32)
    bd = 0.02 * jax.random.normal(ks[1], (1, HIDDEN), jnp.float32)
    wdn = 0.02 * jax.random.normal(ks[2], (HIDDEN, DOWN), jnp.float32)
    bdn = 0.02 * jax.random.normal(ks[3], (1, DOWN), jnp.float32)
    wup = 0.02 * jax.random.normal(ks[4], (DOWN, HIDDEN), jnp.float32)
    bup = 0.02 * jax.random.normal(ks[5], (1, HIDDEN), jnp.float32)
    # LayerNorm params initialize to gamma=1, beta=0 (as in nn.LayerNorm).
    pre_g = jnp.ones((1, HIDDEN), jnp.float32)
    pre_b = jnp.zeros((1, HIDDEN), jnp.float32)
    post_g = jnp.ones((1, HIDDEN), jnp.float32)
    post_b = jnp.zeros((1, HIDDEN), jnp.float32)
    ln_g = jnp.ones((1, HIDDEN), jnp.float32)
    ln_b = jnp.zeros((1, HIDDEN), jnp.float32)
    return (wd, bd, wdn, bdn, wup, bup,
            pre_g, pre_b, post_g, post_b, ln_g, ln_b)


def _reference(hidden_states, input_tensor, params):
    """Pure-JAX reference (matches the PyTorch module in eval mode)."""
    (wd, bd, wdn, bdn, wup, bup,
     pre_g, pre_b, post_g, post_b, ln_g, ln_b) = params

    def ln(x, g, b, eps):
        mu = jnp.mean(x, axis=-1, keepdims=True)
        var = jnp.mean((x - mu) ** 2, axis=-1, keepdims=True)
        return (x - mu) * jax.lax.rsqrt(var + eps) * g + b

    h = hidden_states @ wd + bd
    z = ln(h, pre_g, pre_b, LN_EPS_ADAPTER)
    d = jnp.maximum(z @ wdn + bdn, 0.0)
    u = d @ wup + bup
    u = ln(u, post_g, post_b, LN_EPS_ADAPTER)
    h = u + h
    return ln(h + input_tensor, ln_g, ln_b, LN_EPS_FINAL)


if __name__ == "__main__":
    key = jax.random.PRNGKey(0)
    k_hs, k_in, k_p = jax.random.split(key, 3)

    B, S = 2, 8
    hidden_states = jax.random.normal(k_hs, (B, S, HIDDEN), jnp.float32)
    input_tensor = jax.random.normal(k_in, (B, S, HIDDEN), jnp.float32)
    params = init_params(k_p)

    out = roberta_self_output(hidden_states, input_tensor, params)
    jax.block_until_ready(out)

    assert out.shape == (B, S, HIDDEN)
    assert bool(jnp.all(jnp.isfinite(out)))
    ref = _reference(hidden_states, input_tensor, params)
    err = float(jnp.max(jnp.abs(out - ref)))
    assert err < 5e-2, err  # loose tol: bf16 MXU passes
    print("KERNEL_OK")
</pallas_src>

<mosaic_0001>
module attributes {stable_mosaic.version = 11 : i64} {
  func.func @roberta_self_output_kernel(%arg0: i32, %arg1: memref<8x128xf32, #tpu.memory_space<vmem>>, %arg2: memref<8x128xf32, #tpu.memory_space<vmem>>, %arg3: memref<128x256xbf16, #tpu.memory_space<vmem>>, %arg4: memref<128x128xbf16, #tpu.memory_space<vmem>>, %arg5: memref<128x128xbf16, #tpu.memory_space<vmem>>, %arg6: memref<128x128xbf16, #tpu.memory_space<vmem>>, %arg7: memref<16x128xf32, #tpu.memory_space<vmem>>, %arg8: memref<8x128xf32, #tpu.memory_space<vmem>>) attributes {dimension_semantics = [#tpu.dimension_semantics<parallel>], iteration_bounds = array<i64: 1>, scalar_prefetch = 0 : i64, scratch_operands = 0 : i64, tpu.core_type = #tpu.core_type<tc>, window_params = [{transform_indices = @transform_0, window_bounds = array<i64: 8, 128>}, {transform_indices = @transform_1, window_bounds = array<i64: 8, 128>}, {pipeline_mode = #tpu.pipeline_mode<synchronous>, transform_indices = @transform_2, window_bounds = array<i64: 128, 256>}, {pipeline_mode = #tpu.pipeline_mode<synchronous>, transform_indices = @transform_3, window_bounds = array<i64: 128, 128>}, {pipeline_mode = #tpu.pipeline_mode<synchronous>, transform_indices = @transform_4, window_bounds = array<i64: 128, 128>}, {pipeline_mode = #tpu.pipeline_mode<synchronous>, transform_indices = @transform_5, window_bounds = array<i64: 128, 128>}, {pipeline_mode = #tpu.pipeline_mode<synchronous>, transform_indices = @transform_6, window_bounds = array<i64: 16, 128>}, {transform_indices = @transform_7, window_bounds = array<i64: 8, 128>}]} {
    %c0 = arith.constant 0 : index
    %c0_0 = arith.constant 0 : index
    %0 = vector.load %arg1[%c0, %c0_0] : memref<8x128xf32, #tpu.memory_space<vmem>>, vector<8x128xf32>
    %c0_1 = arith.constant 0 : index
    %c0_2 = arith.constant 0 : index
    %1 = vector.load %arg2[%c0_1, %c0_2] : memref<8x128xf32, #tpu.memory_space<vmem>>, vector<8x128xf32>
    %c0_3 = arith.constant 0 : index
    %c0_4 = arith.constant 0 : index
    %2 = vector.load %arg6[%c0_3, %c0_4] : memref<128x128xbf16, #tpu.memory_space<vmem>>, vector<128x128xbf16>
    %c0_5 = arith.constant 0 : index
    %c0_6 = arith.constant 0 : index
    %3 = vector.load %arg7[%c0_5, %c0_6] : memref<16x128xf32, #tpu.memory_space<vmem>>, vector<16x128xf32>
    %4 = vector.extract_strided_slice %3 {offsets = [0, 0], sizes = [1, 128], strides = [1, 1]} : vector<16x128xf32> to vector<1x128xf32>
    %5 = vector.extract_strided_slice %3 {offsets = [1, 0], sizes = [1, 128], strides = [1, 1]} : vector<16x128xf32> to vector<1x128xf32>
    %6 = vector.extract_strided_slice %3 {offsets = [2, 0], sizes = [1, 128], strides = [1, 1]} : vector<16x128xf32> to vector<1x128xf32>
    %7 = vector.extract_strided_slice %3 {offsets = [3, 0], sizes = [1, 128], strides = [1, 1]} : vector<16x128xf32> to vector<1x128xf32>
    %8 = vector.extract_strided_slice %3 {offsets = [4, 0], sizes = [1, 128], strides = [1, 1]} : vector<16x128xf32> to vector<1x128xf32>
    %9 = vector.extract_strided_slice %3 {offsets = [5, 0], sizes = [1, 128], strides = [1, 1]} : vector<16x128xf32> to vector<1x128xf32>
    %10 = vector.extract_strided_slice %3 {offsets = [6, 0], sizes = [1, 128], strides = [1, 1]} : vector<16x128xf32> to vector<1x128xf32>
    %11 = vector.extract_strided_slice %3 {offsets = [7, 0], sizes = [1, 128], strides = [1, 1]} : vector<16x128xf32> to vector<1x128xf32>
    %12 = vector.extract_strided_slice %3 {offsets = [8, 0], sizes = [1, 128], strides = [1, 1]} : vector<16x128xf32> to vector<1x128xf32>
    %13 = vector.extract_strided_slice %3 {offsets = [9, 0], sizes = [1, 128], strides = [1, 1]} : vector<16x128xf32> to vector<1x128xf32>
    %c0_7 = arith.constant 0 : index
    %c0_8 = arith.constant 0 : index
    %14 = vector.load %arg3[%c0_7, %c0_8] : memref<128x256xbf16, #tpu.memory_space<vmem>>, vector<128x256xbf16>
    %15 = arith.truncf %0 : vector<8x128xf32> to vector<8x128xbf16>
    %cst = arith.constant dense<0.000000e+00> : vector<8x256xf32>
    %16 = tpu.matmul %15, %14, %cst {dimension_numbers = #tpu.dot_dimension_numbers<[1], [0], [0], [1], [0, 0, 1, 1], [], []>} : vector<8x128xbf16>, vector<128x256xbf16>, vector<8x256xf32> -> vector<8x256xf32>
    %17 = vector.extract_strided_slice %16 {offsets = [0, 0], sizes = [8, 128], strides = [1, 1]} : vector<8x256xf32> to vector<8x128xf32>
    %18 = vector.broadcast %4 : vector<1x128xf32> to vector<8x128xf32>
    %19 = arith.addf %17, %18 : vector<8x128xf32>
    %20 = vector.extract_strided_slice %16 {offsets = [0, 128], sizes = [8, 128], strides = [1, 1]} : vector<8x256xf32> to vector<8x128xf32>
    %21 = vector.broadcast %5 : vector<1x128xf32> to vector<8x128xf32>
    %22 = arith.addf %20, %21 : vector<8x128xf32>
    %23 = arith.subf %19, %22 : vector<8x128xf32>
    %24 = arith.mulf %23, %23 : vector<8x128xf32>
    %25 = arith.truncf %24 : vector<8x128xf32> to vector<8x128xbf16>
    %cst_9 = arith.constant dense<0.000000e+00> : vector<8x128xf32>
    %26 = tpu.matmul %25, %2, %cst_9 {dimension_numbers = #tpu.dot_dimension_numbers<[1], [0], [0], [1], [0, 0, 1, 1], [], []>} : vector<8x128xbf16>, vector<128x128xbf16>, vector<8x128xf32> -> vector<8x128xf32>
    %cst_10 = arith.constant 9.99999974E-6 : f32
    %27 = vector.broadcast %cst_10 : f32 to vector<8x128xf32>
    %28 = arith.addf %26, %27 : vector<8x128xf32>
    %29 = math.rsqrt %28 : vector<8x128xf32>
    %30 = arith.mulf %23, %29 : vector<8x128xf32>
    %31 = vector.broadcast %8 : vector<1x128xf32> to vector<8x128xf32>
    %32 = arith.mulf %30, %31 : vector<8x128xf32>
    %33 = vector.broadcast %9 : vector<1x128xf32> to vector<8x128xf32>
    %34 = arith.addf %32, %33 : vector<8x128xf32>
    %c0_11 = arith.constant 0 : index
    %c0_12 = arith.constant 0 : index
    %35 = vector.load %arg4[%c0_11, %c0_12] : memref<128x128xbf16, #tpu.memory_space<vmem>>, vector<128x128xbf16>
    %36 = arith.truncf %34 : vector<8x128xf32> to vector<8x128xbf16>
    %cst_13 = arith.constant dense<0.000000e+00> : vector<8x128xf32>
    %37 = tpu.matmul %36, %35, %cst_13 {dimension_numbers = #tpu.dot_dimension_numbers<[1], [0], [0], [1], [0, 0, 1, 1], [], []>} : vector<8x128xbf16>, vector<128x128xbf16>, vector<8x128xf32> -> vector<8x128xf32>
    %38 = vector.broadcast %6 : vector<1x128xf32> to vector<8x128xf32>
    %39 = arith.addf %37, %38 : vector<8x128xf32>
    %cst_14 = arith.constant 0.000000e+00 : f32
    %40 = vector.broadcast %cst_14 : f32 to vector<8x128xf32>
    %41 = arith.maximumf %39, %40 : vector<8x128xf32>
    %c0_15 = arith.constant 0 : index
    %c0_16 = arith.constant 0 : index
    %42 = vector.load %arg5[%c0_15, %c0_16] : memref<128x128xbf16, #tpu.memory_space<vmem>>, vector<128x128xbf16>
    %43 = arith.truncf %41 : vector<8x128xf32> to vector<8x128xbf16>
    %cst_17 = arith.constant dense<0.000000e+00> : vector<8x128xf32>
    %44 = tpu.matmul %43, %42, %cst_17 {dimension_numbers = #tpu.dot_dimension_numbers<[1], [0], [0], [1], [0, 0, 1, 1], [], []>} : vector<8x128xbf16>, vector<128x128xbf16>, vector<8x128xf32> -> vector<8x128xf32>
    %45 = vector.broadcast %7 : vector<1x128xf32> to vector<8x128xf32>
    %46 = arith.addf %44, %45 : vector<8x128xf32>
    %47 = arith.truncf %46 : vector<8x128xf32> to vector<8x128xbf16>
    %cst_18 = arith.constant dense<0.000000e+00> : vector<8x128xf32>
    %48 = tpu.matmul %47, %2, %cst_18 {dimension_numbers = #tpu.dot_dimension_numbers<[1], [0], [0], [1], [0, 0, 1, 1], [], []>} : vector<8x128xbf16>, vector<128x128xbf16>, vector<8x128xf32> -> vector<8x128xf32>
    %49 = arith.subf %46, %48 : vector<8x128xf32>
    %50 = arith.mulf %49, %49 : vector<8x128xf32>
    %51 = arith.truncf %50 : vector<8x128xf32> to vector<8x128xbf16>
    %cst_19 = arith.constant dense<0.000000e+00> : vector<8x128xf32>
    %52 = tpu.matmul %51, %2, %cst_19 {dimension_numbers = #tpu.dot_dimension_numbers<[1], [0], [0], [1], [0, 0, 1, 1], [], []>} : vector<8x128xbf16>, vector<128x128xbf16>, vector<8x128xf32> -> vector<8x128xf32>
    %cst_20 = arith.constant 9.99999974E-6 : f32
    %53 = vector.broadcast %cst_20 : f32 to vector<8x128xf32>
    %54 = arith.addf %52, %53 : vector<8x128xf32>
    %55 = math.rsqrt %54 : vector<8x128xf32>
    %56 = arith.mulf %49, %55 : vector<8x128xf32>
    %57 = vector.broadcast %10 : vector<1x128xf32> to vector<8x128xf32>
    %58 = arith.mulf %56, %57 : vector<8x128xf32>
    %59 = vector.broadcast %11 : vector<1x128xf32> to vector<8x128xf32>
    %60 = arith.addf %58, %59 : vector<8x128xf32>
    %61 = arith.addf %60, %19 : vector<8x128xf32>
    %62 = arith.addf %61, %1 : vector<8x128xf32>
    %63 = arith.truncf %62 : vector<8x128xf32> to vector<8x128xbf16>
    %cst_21 = arith.constant dense<0.000000e+00> : vector<8x128xf32>
    %64 = tpu.matmul %63, %2, %cst_21 {dimension_numbers = #tpu.dot_dimension_numbers<[1], [0], [0], [1], [0, 0, 1, 1], [], []>} : vector<8x128xbf16>, vector<128x128xbf16>, vector<8x128xf32> -> vector<8x128xf32>
    %65 = arith.subf %62, %64 : vector<8x128xf32>
    %66 = arith.mulf %65, %65 : vector<8x128xf32>
    %67 = arith.truncf %66 : vector<8x128xf32> to vector<8x128xbf16>
    %cst_22 = arith.constant dense<0.000000e+00> : vector<8x128xf32>
    %68 = tpu.matmul %67, %2, %cst_22 {dimension_numbers = #tpu.dot_dimension_numbers<[1], [0], [0], [1], [0, 0, 1, 1], [], []>} : vector<8x128xbf16>, vector<128x128xbf16>, vector<8x128xf32> -> vector<8x128xf32>
    %cst_23 = arith.constant 9.99999996E-13 : f32
    %69 = vector.broadcast %cst_23 : f32 to vector<8x128xf32>
    %70 = arith.addf %68, %69 : vector<8x128xf32>
    %71 = math.rsqrt %70 : vector<8x128xf32>
    %72 = arith.mulf %65, %71 : vector<8x128xf32>
    %73 = vector.broadcast %12 : vector<1x128xf32> to vector<8x128xf32>
    %74 = arith.mulf %72, %73 : vector<8x128xf32>
    %75 = vector.broadcast %13 : vector<1x128xf32> to vector<8x128xf32>
    %76 = arith.addf %74, %75 : vector<8x128xf32>
    %c0_24 = arith.constant 0 : index
    %c0_25 = arith.constant 0 : index
    %77 = vector.load %arg8[%c0_24, %c0_25] : memref<8x128xf32, #tpu.memory_space<vmem>>, vector<8x128xf32>
    tpu.vector_store %arg8[%c0_24, %c0_25], %76 {strides = array<i32>} : memref<8x128xf32, #tpu.memory_space<vmem>>, vector<8x128xf32>,
    return
  }
  func.func @transform_0(%arg0: i32) -> (i32, i32) {
    %c0_i32 = arith.constant 0 : i32
    %c0_i32_0 = arith.constant 0 : i32
    return %arg0, %c0_i32 : i32, i32
  }
  func.func @transform_1(%arg0: i32) -> (i32, i32) {
    %c0_i32 = arith.constant 0 : i32
    %c0_i32_0 = arith.constant 0 : i32
    return %arg0, %c0_i32 : i32, i32
  }
  func.func @transform_2(%arg0: i32) -> (i32, i32) {
    %c0_i32 = arith.constant 0 : i32
    %c0_i32_0 = arith.constant 0 : i32
    %c0_i32_1 = arith.constant 0 : i32
    return %c0_i32, %c0_i32_0 : i32, i32
  }
  func.func @transform_3(%arg0: i32) -> (i32, i32) {
    %c0_i32 = arith.constant 0 : i32
    %c0_i32_0 = arith.constant 0 : i32
    %c0_i32_1 = arith.constant 0 : i32
    return %c0_i32, %c0_i32_0 : i32, i32
  }
  func.func @transform_4(%arg0: i32) -> (i32, i32) {
    %c0_i32 = arith.constant 0 : i32
    %c0_i32_0 = arith.constant 0 : i32
    %c0_i32_1 = arith.constant 0 : i32
    return %c0_i32, %c0_i32_0 : i32, i32
  }
  func.func @transform_5(%arg0: i32) -> (i32, i32) {
    %c0_i32 = arith.constant 0 : i32
    %c0_i32_0 = arith.constant 0 : i32
    %c0_i32_1 = arith.constant 0 : i32
    return %c0_i32, %c0_i32_0 : i32, i32
  }
  func.func @transform_6(%arg0: i32) -> (i32, i32) {
    %c0_i32 = arith.constant 0 : i32
    %c0_i32_0 = arith.constant 0 : i32
    %c0_i32_1 = arith.constant 0 : i32
    return %c0_i32, %c0_i32_0 : i32, i32
  }
  func.func @transform_7(%arg0: i32) -> (i32, i32) {
    %c0_i32 = arith.constant 0 : i32
    %c0_i32_0 = arith.constant 0 : i32
    return %arg0, %c0_i32 : i32, i32
  }
}

</mosaic_0001>

<llo_original>
// kernel: tpu_custom_call.1
$region0: #{tpu_custom_call.1}
  #allocation0 [shape = 'u32[]', space=smem, size = 0x4, offset = 0x4, fixed_abs, tag = 'smem constant byte address 0x4 - core index']
  #allocation1 [shape = 'u32[144,128]{1,0:T(1,128)}', space=vmem, size = 0x12000, scoped, tag = 'internal scratch']
  %s0 = inlined_call_operand.hbm [shape: f32[8,128], index: 0, kind: input, shape index: {}]
  %s1 = inlined_call_operand.hbm [shape: f32[8,128], index: 1, kind: input, shape index: {}]
  %s2 = inlined_call_operand.hbm [shape: bf16[128,256], index: 2, kind: input, shape index: {}]
  %s3 = inlined_call_operand.hbm [shape: bf16[128,128], index: 3, kind: input, shape index: {}]
  %s4 = inlined_call_operand.hbm [shape: bf16[128,128], index: 4, kind: input, shape index: {}]
  %s5 = inlined_call_operand.hbm [shape: bf16[128,128], index: 5, kind: input, shape index: {}]
  %s6 = inlined_call_operand.vmem [shape: f32[16,128], index: 6, kind: input, shape index: {}]
  %s7 = inlined_call_operand.hbm [shape: f32[8,128], index: 7, kind: output, shape index: {}]
  %s8 = sld [smem:[#allocation0]]
  $region62: #{tpu_custom_call.1} parent=0
    _
  %s10 = ssub.s32 1, %s8
  %s11 = scalar_select 0, %s10, %s8
  $region1: #{tpu_custom_call.1} parent=0
    #allocation2 [shape = 'u8[4096]{0}', space=vmem, size = 0x1000, scoped, tag = 'input window, operand 0, single buffered']
    #allocation3 [shape = 's32[1]{0}', space=sflag, size = 0x4, scoped, tag = 'scoped memory for tpu_custom_call.1']
    #allocation4 [shape = 's32[1]{0}', space=sflag, size = 0x4, scoped, tag = 'scoped memory for tpu_custom_call.1']
    #allocation5 [shape = 'u8[4096]{0}', space=vmem, size = 0x1000, scoped, tag = 'input window, operand 1, single buffered']
    #allocation6 [shape = 's32[1]{0}', space=sflag, size = 0x4, scoped, tag = 'scoped memory for tpu_custom_call.1']
    #allocation7 [shape = 'u8[65536]{0}', space=vmem, size = 0x10000, scoped, tag = 'input window, operand 2, single buffered']
    #allocation8 [shape = 'u8[32768]{0}', space=vmem, size = 0x8000, scoped, tag = 'input window, operand 3, single buffered']
    #allocation9 [shape = 's32[1]{0}', space=sflag, size = 0x4, scoped, tag = 'scoped memory for tpu_custom_call.1']
    #allocation10 [shape = 'u8[32768]{0}', space=vmem, size = 0x8000, scoped, tag = 'input window, operand 4, single buffered']
    #allocation11 [shape = 'u8[32768]{0}', space=vmem, size = 0x8000, scoped, tag = 'input window, operand 5, single buffered']
    #allocation12 [shape = 's32[1]{0}', space=sflag, size = 0x4, scoped, tag = 'scoped memory for tpu_custom_call.1']
    #allocation13 [shape = 'u8[4096]{0}', space=vmem, size = 0x1000, scoped, tag = 'output window, operand 0, single buffered']
    %12 = vsyncpa [#allocation3], 0
    %13 = vsyncpa [#allocation6], 0
    %14 = vsyncpa [#allocation9], 0
    %15 = vsyncpa [#allocation12], 0
    %16 = vsyncpa [#allocation4], 0
    // Predicated region
    $region2: #{tpu_custom_call.1} parent=1 // pred_check
      _
    $region3: #{tpu_custom_call.1} parent=1 // pred_check_branch
      %18 = sbr.rel (0) target = $region5
    $region4: #{tpu_custom_call.1} parent=1 // pred_region
      %s20 = ssub.s32 128, 128
      %21 = vsyncadd [#allocation3], %s20
      %s23 = sshll.u32 [#allocation2], 4
      %s24 = int_to_ptr.vmem [resolvable:$true] %s23
      %26 = dma.hbm_to_vmem [thread:$0]  %s0, 128, %s24, [#allocation3]
    $region5: #{tpu_custom_call.1} parent=1 // pred_fallthru
      _
    // Predicated region
    $region6: #{tpu_custom_call.1} parent=1 // pred_check
      _
    $region7: #{tpu_custom_call.1} parent=1 // pred_check_branch
      %28 = sbr.rel (0) target = $region9
    $region8: #{tpu_custom_call.1} parent=1 // pred_region
      %s30 = ssub.s32 128, 128
      %31 = vsyncadd [#allocation6], %s30
      %s33 = sshll.u32 [#allocation5], 4
      %s34 = int_to_ptr.vmem [resolvable:$true] %s33
      %36 = dma.hbm_to_vmem [thread:$0]  %s1, 128, %s34, [#allocation6]
    $region9: #{tpu_custom_call.1} parent=1 // pred_fallthru
      _
    // Predicated region
    $region10: #{tpu_custom_call.1} parent=1 // pred_check
      _
    $region11: #{tpu_custom_call.1} parent=1 // pred_check_branch
      %38 = sbr.rel (0) target = $region13
    $region12: #{tpu_custom_call.1} parent=1 // pred_region
      %s40 = ssub.s32 2048, 2048
      %41 = vsyncadd [#allocation6], %s40
      %s42 = sshll.u32 [#allocation7], 4
      %s43 = int_to_ptr.vmem [resolvable:$true] %s42
      %48 = dma.hbm_to_vmem [thread:$0]  %s2, 2048, %s43, [#allocation6], 128, 128, 8
    $region13: #{tpu_custom_call.1} parent=1 // pred_fallthru
      _
    // Predicated region
    $region14: #{tpu_custom_call.1} parent=1 // pred_check
      _
    $region15: #{tpu_custom_call.1} parent=1 // pred_check_branch
      %50 = sbr.rel (0) target = $region17
    $region16: #{tpu_custom_call.1} parent=1 // pred_region
      %s52 = ssub.s32 1024, 1024
      %53 = vsyncadd [#allocation9], %s52
      %s54 = sshll.u32 [#allocation8], 4
      %s55 = int_to_ptr.vmem [resolvable:$true] %s54
      %60 = dma.hbm_to_vmem [thread:$0]  %s3, 1024, %s55, [#allocation9], 64, 64, 4
    $region17: #{tpu_custom_call.1} parent=1 // pred_fallthru
      _
    // Predicated region
    $region18: #{tpu_custom_call.1} parent=1 // pred_check
      _
    $region19: #{tpu_custom_call.1} parent=1 // pred_check_branch
      %62 = sbr.rel (0) target = $region21
    $region20: #{tpu_custom_call.1} parent=1 // pred_region
      %s64 = ssub.s32 1024, 1024
      %65 = vsyncadd [#allocation9], %s64
      %s66 = sshll.u32 [#allocation10], 4
      %s67 = int_to_ptr.vmem [resolvable:$true] %s66
      %72 = dma.hbm_to_vmem [thread:$0]  %s4, 1024, %s67, [#allocation9], 64, 64, 4
    $region21: #{tpu_custom_call.1} parent=1 // pred_fallthru
      _
    // Predicated region
    $region22: #{tpu_custom_call.1} parent=1 // pred_check
      _
    $region23: #{tpu_custom_call.1} parent=1 // pred_check_branch
      %74 = sbr.rel (0) target = $region25
    $region24: #{tpu_custom_call.1} parent=1 // pred_region
      %s76 = ssub.s32 1024, 1024
      %77 = vsyncadd [#allocation12], %s76
      %s78 = sshll.u32 [#allocation11], 4
      %s79 = int_to_ptr.vmem [resolvable:$true] %s78
      %84 = dma.hbm_to_vmem [thread:$0]  %s5, 1024, %s79, [#allocation12], 64, 64, 4
    $region25: #{tpu_custom_call.1} parent=1 // pred_fallthru
      _
    // Predicated region
    $region26: #{tpu_custom_call.1} parent=1 // pred_check
      _
    $region27: #{tpu_custom_call.1} parent=1 // pred_check_branch
      %86 = sbr.rel (0) target = $region29
    $region28: #{tpu_custom_call.1} parent=1 // pred_region
      _
    $region29: #{tpu_custom_call.1} parent=1 // pred_fallthru
      _
    // Predicated region
    $region30: #{tpu_custom_call.1} parent=1 // pred_check
      _
    $region31: #{tpu_custom_call.1} parent=1 // pred_check_branch
      %88 = sbr.rel (0) target = $region33
    $region32: #{tpu_custom_call.1} parent=1 // pred_region
      %89 = dma.done [#allocation3], 128
    $region33: #{tpu_custom_call.1} parent=1 // pred_fallthru
      _
    // Predicated region
    $region34: #{tpu_custom_call.1} parent=1 // pred_check
      _
    $region35: #{tpu_custom_call.1} parent=1 // pred_check_branch
      %91 = sbr.rel (0) target = $region37
    $region36: #{tpu_custom_call.1} parent=1 // pred_region
      %92 = dma.done [#allocation6], 128
    $region37: #{tpu_custom_call.1} parent=1 // pred_fallthru
      _
    // Predicated region
    $region38: #{tpu_custom_call.1} parent=1 // pred_check
      _
    $region39: #{tpu_custom_call.1} parent=1 // pred_check_branch
      %94 = sbr.rel (0) target = $region41
    $region40: #{tpu_custom_call.1} parent=1 // pred_region
      %95 = dma.done [#allocation6], 2048
    $region41: #{tpu_custom_call.1} parent=1 // pred_fallthru
      _
    // Predicated region
    $region42: #{tpu_custom_call.1} parent=1 // pred_check
      _
    $region43: #{tpu_custom_call.1} parent=1 // pred_check_branch
      %97 = sbr.rel (0) target = $region45
    $region44: #{tpu_custom_call.1} parent=1 // pred_region
      %98 = dma.done [#allocation9], 1024
    $region45: #{tpu_custom_call.1} parent=1 // pred_fallthru
      _
    // Predicated region
    $region46: #{tpu_custom_call.1} parent=1 // pred_check
      _
    $region47: #{tpu_custom_call.1} parent=1 // pred_check_branch
      %100 = sbr.rel (0) target = $region49
    $region48: #{tpu_custom_call.1} parent=1 // pred_region
      %101 = dma.done [#allocation9], 1024
    $region49: #{tpu_custom_call.1} parent=1 // pred_fallthru
      _
    // Predicated region
    $region50: #{tpu_custom_call.1} parent=1 // pred_check
      _
    $region51: #{tpu_custom_call.1} parent=1 // pred_check_branch
      %103 = sbr.rel (0) target = $region53
    $region52: #{tpu_custom_call.1} parent=1 // pred_region
      %104 = dma.done [#allocation12], 1024
    $region53: #{tpu_custom_call.1} parent=1 // pred_fallthru
      _
    %v106 = vld [vmem:[#allocation2] sm:$0xff]
    %v107 = vld [vmem:[#allocation5] sm:$0xff]
    %v108 = vld [vmem:[#allocation11] sm:$0xf]
    %v109 = vld [vmem:[#allocation11 + $0x4] sm:$0xf]
    %v110 = vld [vmem:[#allocation11 + $0x8] sm:$0xf]
    %v111 = vld [vmem:[#allocation11 + $0xc] sm:$0xf]
    %v112 = vld [vmem:[#allocation11 + $0x10] sm:$0xf]
    %v113 = vld [vmem:[#allocation11 + $0x14] sm:$0xf]
    %v114 = vld [vmem:[#allocation11 + $0x18] sm:$0xf]
    %v115 = vld [vmem:[#allocation11 + $0x1c] sm:$0xf]
    %v116 = vld [vmem:[#allocation11 + $0x20] sm:$0xf]
    %v117 = vld [vmem:[#allocation11 + $0x24] sm:$0xf]
    %v118 = vld [vmem:[#allocation11 + $0x28] sm:$0xf]
    %v119 = vld [vmem:[#allocation11 + $0x2c] sm:$0xf]
    %v120 = vld [vmem:[#allocation11 + $0x30] sm:$0xf]
    %v121 = vld [vmem:[#allocation11 + $0x34] sm:$0xf]
    %v122 = vld [vmem:[#allocation11 + $0x38] sm:$0xf]
    %v123 = vld [vmem:[#allocation11 + $0x3c] sm:$0xf]
    %v124 = vld [vmem:[%s6] sm:$0xff]
    %v125 = vld [vmem:[%s6 + $0x8] sm:$0xff]
    %v126 = vld [vmem:[#allocation7] sm:$0xff]
    %v127 = vld [vmem:[#allocation7 + $0x8] sm:$0xff]
    %v128 = vld [vmem:[#allocation7 + $0x10] sm:$0xff]
    %v129 = vld [vmem:[#allocation7 + $0x18] sm:$0xff]
    %v130 = vld [vmem:[#allocation7 + $0x20] sm:$0xff]
    %v131 = vld [vmem:[#allocation7 + $0x28] sm:$0xff]
    %v132 = vld [vmem:[#allocation7 + $0x30] sm:$0xff]
    %v133 = vld [vmem:[#allocation7 + $0x38] sm:$0xff]
    %v134 = vld [vmem:[#allocation7 + $0x40] sm:$0xff]
    %v135 = vld [vmem:[#allocation7 + $0x48] sm:$0xff]
    %v136 = vld [vmem:[#allocation7 + $0x50] sm:$0xff]
    %v137 = vld [vmem:[#allocation7 + $0x58] sm:$0xff]
    %v138 = vld [vmem:[#allocation7 + $0x60] sm:$0xff]
    %v139 = vld [vmem:[#allocation7 + $0x68] sm:$0xff]
    %v140 = vld [vmem:[#allocation7 + $0x70] sm:$0xff]
    %v141 = vld [vmem:[#allocation7 + $0x78] sm:$0xff]
    %v142 = vpack.c.bf16 %v106, %v106
    %v159 = vunpack.c.l.b16 %v126
    %v160 = vunpack.c.h.b16 %v126
    %v161 = vunpack.c.l.b16 %v127
    %v162 = vunpack.c.h.b16 %v127
    %v163 = vunpack.c.l.b16 %v128
    %v164 = vunpack.c.h.b16 %v128
    %v165 = vunpack.c.l.b16 %v129
    %v166 = vunpack.c.h.b16 %v129
    %v167 = vunpack.c.l.b16 %v130
    %v168 = vunpack.c.h.b16 %v130
    %v169 = vunpack.c.l.b16 %v131
    %v170 = vunpack.c.h.b16 %v131
    %v171 = vunpack.c.l.b16 %v132
    %v172 = vunpack.c.h.b16 %v132
    %v173 = vunpack.c.l.b16 %v133
    %v174 = vunpack.c.h.b16 %v133
    %v175 = vunpack.c.l.b16 %v134
    %v176 = vunpack.c.h.b16 %v134
    %v177 = vunpack.c.l.b16 %v135
    %v178 = vunpack.c.h.b16 %v135
    %v179 = vunpack.c.l.b16 %v136
    %v180 = vunpack.c.h.b16 %v136
    %v181 = vunpack.c.l.b16 %v137
    %v182 = vunpack.c.h.b16 %v137
    %v183 = vunpack.c.l.b16 %v138
    %v184 = vunpack.c.h.b16 %v138
    %v185 = vunpack.c.l.b16 %v139
    %v186 = vunpack.c.h.b16 %v139
    %v187 = vunpack.c.l.b16 %v140
    %v188 = vunpack.c.h.b16 %v140
    %v189 = vunpack.c.l.b16 %v141
    %v190 = vunpack.c.h.b16 %v141
    %v191 = vpack.c.b16 %v161, %v159
    %v192 = vpack.c.b16 %v162, %v160
    %v193 = vpack.c.b16 %v165, %v163
    %v194 = vpack.c.b16 %v166, %v164
    %v195 = vpack.c.b16 %v169, %v167
    %v196 = vpack.c.b16 %v170, %v168
    %v197 = vpack.c.b16 %v173, %v171
    %v198 = vpack.c.b16 %v174, %v172
    %v199 = vpack.c.b16 %v177, %v175
    %v200 = vpack.c.b16 %v178, %v176
    %v201 = vpack.c.b16 %v181, %v179
    %v202 = vpack.c.b16 %v182, %v180
    %v203 = vpack.c.b16 %v185, %v183
    %v204 = vpack.c.b16 %v186, %v184
    %v205 = vpack.c.b16 %v189, %v187
    %v206 = vpack.c.b16 %v190, %v188
    %223 = vmatprep.subr.bf16.mxu0 %v192
    %224 = vmatpush1.bf16.msra.mxu0 %v191
    %225 = vmatprep.subr.bf16.mxu0 %v194
    %226 = vmatpush1.bf16.msra.mxu0 %v193
    %227 = vmatprep.subr.bf16.mxu0 %v196
    %228 = vmatpush1.bf16.msra.mxu0 %v195
    %229 = vmatprep.subr.bf16.mxu0 %v198
    %230 = vmatpush1.bf16.msra.mxu0 %v197
    %231 = vmatprep.subr.bf16.mxu0 %v200
    %232 = vmatpush1.bf16.msra.mxu0 %v199
    %233 = vmatprep.subr.bf16.mxu0 %v202
    %234 = vmatpush1.bf16.msra.mxu0 %v201
    %235 = vmatprep.subr.bf16.mxu0 %v204
    %236 = vmatpush1.bf16.msra.mxu0 %v203
    %237 = vmatprep.subr.bf16.mxu0 %v206
    %238 = vmatpush1.bf16.msra.mxu0 %v205
    %239 = vmatprep.subr.bf16.mxu0 0
    %240 = vmatpush1.bf16.msra.mxu0 0
    %241 = vmatprep.subr.bf16.mxu0 0
    %242 = vmatpush1.bf16.msra.mxu0 0
    %243 = vmatprep.subr.bf16.mxu0 0
    %244 = vmatpush1.bf16.msra.mxu0 0
    %245 = vmatprep.subr.bf16.mxu0 0
    %246 = vmatpush1.bf16.msra.mxu0 0
    %247 = vmatprep.subr.bf16.mxu0 0
    %248 = vmatpush1.bf16.msra.mxu0 0
    %249 = vmatprep.subr.bf16.mxu0 0
    %250 = vmatpush1.bf16.msra.mxu0 0
    %251 = vmatprep.subr.bf16.mxu0 0
    %252 = vmatpush1.bf16.msra.mxu0 0
    %253 = vmatprep.subr.bf16.mxu0 0
    %254 = vmatpush1.bf16.msra.mxu0 0
    %255 = vmatprep.mubr.bf16.mxu0 0
    %256 = vmatmul.mubr.bf16.gmra.mrb[0].mxu0 %v142
    %v257 = vpop.f32.mrb[0].mxu0
    %v258 = vadd.f32 0.0, %v257
    %v259 = vpop.f32.mrb[0].mxu0
    %v260 = vadd.f32 0.0, %v259
    %v261 = vpop.f32.mrb[0].mxu0
    %v262 = vpop.f32.mrb[0].mxu0
    %263 = vdwg.mxu0
    %v264 = vlaneseq
    %v265 = vshrl.u32 %v264, 7
    %v266 = vsub.s32 0, %v265
    %v267 = vrot.slane %v124, %v266
    %v268 = vadd.f32 %v258, %v267
    %v269 = vlaneseq
    %v270 = vshrl.u32 %v269, 7
    %v271 = vsub.s32 1, %v270
    %v272 = vrot.slane %v124, %v271
    %v273 = vadd.f32 %v260, %v272
    %v274 = vsub.f32 %v268, %v273
    %v275 = vmul.f32 %v274, %v274
    %v276 = vpack.c.bf16 %v275, %v275
    %v293 = vunpack.c.l.b16 %v108
    %v294 = vunpack.c.l.b16 %v109
    %v295 = vunpack.c.l.b16 %v110
    %v296 = vunpack.c.l.b16 %v111
    %v297 = vunpack.c.l.b16 %v112
    %v298 = vunpack.c.l.b16 %v113
    %v299 = vunpack.c.l.b16 %v114
    %v300 = vunpack.c.l.b16 %v115
    %v301 = vunpack.c.l.b16 %v116
    %v302 = vunpack.c.l.b16 %v117
    %v303 = vunpack.c.l.b16 %v118
    %v304 = vunpack.c.l.b16 %v119
    %v305 = vunpack.c.l.b16 %v120
    %v306 = vunpack.c.l.b16 %v121
    %v307 = vunpack.c.l.b16 %v122
    %v308 = vunpack.c.l.b16 %v123
    %v309 = vpack.c.b16 %v294, %v293
    %v310 = vpack.c.b16 %v296, %v295
    %v311 = vpack.c.b16 %v298, %v297
    %v312 = vpack.c.b16 %v300, %v299
    %v313 = vpack.c.b16 %v302, %v301
    %v314 = vpack.c.b16 %v304, %v303
    %v315 = vpack.c.b16 %v306, %v305
    %v316 = vpack.c.b16 %v308, %v307
    %325 = vmatprep.subr.bf16.mxu0 0
    %326 = vmatpush1.bf16.msra.mxu0 %v309
    %327 = vmatprep.subr.bf16.mxu0 0
    %328 = vmatpush1.bf16.msra.mxu0 %v310
    %329 = vmatprep.subr.bf16.mxu0 0
    %330 = vmatpush1.bf16.msra.mxu0 %v311
    %331 = vmatprep.subr.bf16.mxu0 0
    %332 = vmatpush1.bf16.msra.mxu0 %v312
    %333 = vmatprep.subr.bf16.mxu0 0
    %334 = vmatpush1.bf16.msra.mxu0 %v313
    %335 = vmatprep.subr.bf16.mxu0 0
    %336 = vmatpush1.bf16.msra.mxu0 %v314
    %337 = vmatprep.subr.bf16.mxu0 0
    %338 = vmatpush1.bf16.msra.mxu0 %v315
    %339 = vmatprep.subr.bf16.mxu0 0
    %340 = vmatpush1.bf16.msra.mxu0 %v316
    %341 = vmatprep.subr.bf16.mxu0 0
    %342 = vmatpush1.bf16.msra.mxu0 0
    %343 = vmatprep.subr.bf16.mxu0 0
    %344 = vmatpush1.bf16.msra.mxu0 0
    %345 = vmatprep.subr.bf16.mxu0 0
    %346 = vmatpush1.bf16.msra.mxu0 0
    %347 = vmatprep.subr.bf16.mxu0 0
    %348 = vmatpush1.bf16.msra.mxu0 0
    %349 = vmatprep.subr.bf16.mxu0 0
    %350 = vmatpush1.bf16.msra.mxu0 0
    %351 = vmatprep.subr.bf16.mxu0 0
    %352 = vmatpush1.bf16.msra.mxu0 0
    %353 = vmatprep.subr.bf16.mxu0 0
    %354 = vmatpush1.bf16.msra.mxu0 0
    %355 = vmatprep.subr.bf16.mxu0 0
    %356 = vmatpush1.bf16.msra.mxu0 0
    %357 = vmatprep.mubr.bf16.mxu0 0
    %358 = vmatmul.mubr.bf16.gmra.mrb[0].mxu0 %v276
    %v359 = vpop.f32.mrb[0].mxu0
    %v360 = vadd.f32 1e-05, %v359
    %v361 = vpop.f32.mrb[0].mxu0
    %v362 = vpop.f32.mrb[0].mxu0
    %v363 = vpop.f32.mrb[0].mxu0
    %364 = vdwg.mxu0
    %v365 = vrsqrt.pop %v360
    %v366 = vmul.f32 %v274, %v365
    %v367 = vlaneseq
    %v368 = vshrl.u32 %v367, 7
    %v369 = vsub.s32 4, %v368
    %v370 = vrot.slane %v124, %v369
    %v371 = vmul.f32 %v366, %v370
    %v372 = vlaneseq
    %v373 = vshrl.u32 %v372, 7
    %v374 = vsub.s32 5, %v373
    %v375 = vrot.slane %v124, %v374
    %v376 = vadd.f32 %v371, %v375
    %v377 = vld [vmem:[#allocation8] sm:$0xf]
    %v378 = vld [vmem:[#allocation8 + $0x4] sm:$0xf]
    %v379 = vld [vmem:[#allocation8 + $0x8] sm:$0xf]
    %v380 = vld [vmem:[#allocation8 + $0xc] sm:$0xf]
    %v381 = vld [vmem:[#allocation8 + $0x10] sm:$0xf]
    %v382 = vld [vmem:[#allocation8 + $0x14] sm:$0xf]
    %v383 = vld [vmem:[#allocation8 + $0x18] sm:$0xf]
    %v384 = vld [vmem:[#allocation8 + $0x1c] sm:$0xf]
    %v385 = vld [vmem:[#allocation8 + $0x20] sm:$0xf]
    %v386 = vld [vmem:[#allocation8 + $0x24] sm:$0xf]
    %v387 = vld [vmem:[#allocation8 + $0x28] sm:$0xf]
    %v388 = vld [vmem:[#allocation8 + $0x2c] sm:$0xf]
    %v389 = vld [vmem:[#allocation8 + $0x30] sm:$0xf]
    %v390 = vld [vmem:[#allocation8 + $0x34] sm:$0xf]
    %v391 = vld [vmem:[#allocation8 + $0x38] sm:$0xf]
    %v392 = vld [vmem:[#allocation8 + $0x3c] sm:$0xf]
    %v393 = vpack.c.bf16 %v376, %v376
    %v394 = vlaneseq
    %v395 = vshrl.u32 %v394, 7
    %v396 = vsub.s32 2, %v395
    %v397 = vrot.slane %v124, %v396
    %v414 = vunpack.c.l.b16 %v377
    %v415 = vunpack.c.l.b16 %v378
    %v416 = vunpack.c.l.b16 %v379
    %v417 = vunpack.c.l.b16 %v380
    %v418 = vunpack.c.l.b16 %v381
    %v419 = vunpack.c.l.b16 %v382
    %v420 = vunpack.c.l.b16 %v383
    %v421 = vunpack.c.l.b16 %v384
    %v422 = vunpack.c.l.b16 %v385
    %v423 = vunpack.c.l.b16 %v386
    %v424 = vunpack.c.l.b16 %v387
    %v425 = vunpack.c.l.b16 %v388
    %v426 = vunpack.c.l.b16 %v389
    %v427 = vunpack.c.l.b16 %v390
    %v428 = vunpack.c.l.b16 %v391
    %v429 = vunpack.c.l.b16 %v392
    %v430 = vpack.c.b16 %v415, %v414
    %v431 = vpack.c.b16 %v417, %v416
    %v432 = vpack.c.b16 %v419, %v418
    %v433 = vpack.c.b16 %v421, %v420
    %v434 = vpack.c.b16 %v423, %v422
    %v435 = vpack.c.b16 %v425, %v424
    %v436 = vpack.c.b16 %v427, %v426
    %v437 = vpack.c.b16 %v429, %v428
    %446 = vmatprep.subr.bf16.mxu0 0
    %447 = vmatpush1.bf16.msra.mxu0 %v430
    %448 = vmatprep.subr.bf16.mxu0 0
    %449 = vmatpush1.bf16.msra.mxu0 %v431
    %450 = vmatprep.subr.bf16.mxu0 0
    %451 = vmatpush1.bf16.msra.mxu0 %v432
    %452 = vmatprep.subr.bf16.mxu0 0
    %453 = vmatpush1.bf16.msra.mxu0 %v433
    %454 = vmatprep.subr.bf16.mxu0 0
    %455 = vmatpush1.bf16.msra.mxu0 %v434
    %456 = vmatprep.subr.bf16.mxu0 0
    %457 = vmatpush1.bf16.msra.mxu0 %v435
    %458 = vmatprep.subr.bf16.mxu0 0
    %459 = vmatpush1.bf16.msra.mxu0 %v436
    %460 = vmatprep.subr.bf16.mxu0 0
    %461 = vmatpush1.bf16.msra.mxu0 %v437
    %462 = vmatprep.subr.bf16.mxu0 0
    %463 = vmatpush1.bf16.msra.mxu0 0
    %464 = vmatprep.subr.bf16.mxu0 0
    %465 = vmatpush1.bf16.msra.mxu0 0
    %466 = vmatprep.subr.bf16.mxu0 0
    %467 = vmatpush1.bf16.msra.mxu0 0
    %468 = vmatprep.subr.bf16.mxu0 0
    %469 = vmatpush1.bf16.msra.mxu0 0
    %470 = vmatprep.subr.bf16.mxu0 0
    %471 = vmatpush1.bf16.msra.mxu0 0
    %472 = vmatprep.subr.bf16.mxu0 0
    %473 = vmatpush1.bf16.msra.mxu0 0
    %474 = vmatprep.subr.bf16.mxu0 0
    %475 = vmatpush1.bf16.msra.mxu0 0
    %476 = vmatprep.subr.bf16.mxu0 0
    %477 = vmatpush1.bf16.msra.mxu0 0
    %478 = vmatprep.mubr.bf16.mxu0 0
    %479 = vmatmul.mubr.bf16.gmra.mrb[0].mxu0 %v393
    %v480 = vpop.f32.mrb[0].mxu0
    %v481 = vadd.f32 %v397, %v480
    %v482 = vpop.f32.mrb[0].mxu0
    %v483 = vpop.f32.mrb[0].mxu0
    %v484 = vpop.f32.mrb[0].mxu0
    %485 = vdwg.mxu0
    %v486 = vmax.f32 %v481, 0.0
    %v487 = vld [vmem:[#allocation10] sm:$0xf]
    %v488 = vld [vmem:[#allocation10 + $0x4] sm:$0xf]
    %v489 = vld [vmem:[#allocation10 + $0x8] sm:$0xf]
    %v490 = vld [vmem:[#allocation10 + $0xc] sm:$0xf]
    %v491 = vld [vmem:[#allocation10 + $0x10] sm:$0xf]
    %v492 = vld [vmem:[#allocation10 + $0x14] sm:$0xf]
    %v493 = vld [vmem:[#allocation10 + $0x18] sm:$0xf]
    %v494 = vld [vmem:[#allocation10 + $0x1c] sm:$0xf]
    %v495 = vld [vmem:[#allocation10 + $0x20] sm:$0xf]
    %v496 = vld [vmem:[#allocation10 + $0x24] sm:$0xf]
    %v497 = vld [vmem:[#allocation10 + $0x28] sm:$0xf]
    %v498 = vld [vmem:[#allocation10 + $0x2c] sm:$0xf]
    %v499 = vld [vmem:[#allocation10 + $0x30] sm:$0xf]
    %v500 = vld [vmem:[#allocation10 + $0x34] sm:$0xf]
    %v501 = vld [vmem:[#allocation10 + $0x38] sm:$0xf]
    %v502 = vld [vmem:[#allocation10 + $0x3c] sm:$0xf]
    %v503 = vpack.c.bf16 %v486, %v486
    %v504 = vlaneseq
    %v505 = vshrl.u32 %v504, 7
    %v506 = vsub.s32 3, %v505
    %v507 = vrot.slane %v124, %v506
    %v524 = vunpack.c.l.b16 %v487
    %v525 = vunpack.c.l.b16 %v488
    %v526 = vunpack.c.l.b16 %v489
    %v527 = vunpack.c.l.b16 %v490
    %v528 = vunpack.c.l.b16 %v491
    %v529 = vunpack.c.l.b16 %v492
    %v530 = vunpack.c.l.b16 %v493
    %v531 = vunpack.c.l.b16 %v494
    %v532 = vunpack.c.l.b16 %v495
    %v533 = vunpack.c.l.b16 %v496
    %v534 = vunpack.c.l.b16 %v497
    %v535 = vunpack.c.l.b16 %v498
    %v536 = vunpack.c.l.b16 %v499
    %v537 = vunpack.c.l.b16 %v500
    %v538 = vunpack.c.l.b16 %v501
    %v539 = vunpack.c.l.b16 %v502
    %v540 = vpack.c.b16 %v525, %v524
    %v541 = vpack.c.b16 %v527, %v526
    %v542 = vpack.c.b16 %v529, %v528
    %v543 = vpack.c.b16 %v531, %v530
    %v544 = vpack.c.b16 %v533, %v532
    %v545 = vpack.c.b16 %v535, %v534
    %v546 = vpack.c.b16 %v537, %v536
    %v547 = vpack.c.b16 %v539, %v538
    %556 = vmatprep.subr.bf16.mxu0 0
    %557 = vmatpush1.bf16.msra.mxu0 %v540
    %558 = vmatprep.subr.bf16.mxu0 0
    %559 = vmatpush1.bf16.msra.mxu0 %v541
    %560 = vmatprep.subr.bf16.mxu0 0
    %561 = vmatpush1.bf16.msra.mxu0 %v542
    %562 = vmatprep.subr.bf16.mxu0 0
    %563 = vmatpush1.bf16.msra.mxu0 %v543
    %564 = vmatprep.subr.bf16.mxu0 0
    %565 = vmatpush1.bf16.msra.mxu0 %v544
    %566 = vmatprep.subr.bf16.mxu0 0
    %567 = vmatpush1.bf16.msra.mxu0 %v545
    %568 = vmatprep.subr.bf16.mxu0 0
    %569 = vmatpush1.bf16.msra.mxu0 %v546
    %570 = vmatprep.subr.bf16.mxu0 0
    %571 = vmatpush1.bf16.msra.mxu0 %v547
    %572 = vmatprep.subr.bf16.mxu0 0
    %573 = vmatpush1.bf16.msra.mxu0 0
    %574 = vmatprep.subr.bf16.mxu0 0
    %575 = vmatpush1.bf16.msra.mxu0 0
    %576 = vmatprep.subr.bf16.mxu0 0
    %577 = vmatpush1.bf16.msra.mxu0 0
    %578 = vmatprep.subr.bf16.mxu0 0
    %579 = vmatpush1.bf16.msra.mxu0 0
    %580 = vmatprep.subr.bf16.mxu0 0
    %581 = vmatpush1.bf16.msra.mxu0 0
    %582 = vmatprep.subr.bf16.mxu0 0
    %583 = vmatpush1.bf16.msra.mxu0 0
    %584 = vmatprep.subr.bf16.mxu0 0
    %585 = vmatpush1.bf16.msra.mxu0 0
    %586 = vmatprep.subr.bf16.mxu0 0
    %587 = vmatpush1.bf16.msra.mxu0 0
    %588 = vmatprep.mubr.bf16.mxu0 0
    %589 = vmatmul.mubr.bf16.gmra.mrb[0].mxu0 %v503
    %v590 = vpop.f32.mrb[0].mxu0
    %v591 = vadd.f32 %v507, %v590
    %v592 = vpop.f32.mrb[0].mxu0
    %v593 = vpop.f32.mrb[0].mxu0
    %v594 = vpop.f32.mrb[0].mxu0
    %595 = vdwg.mxu0
    %v596 = vpack.c.bf16 %v591, %v591
    %597 = vmatprep.subr.bf16.mxu0 0
    %598 = vmatpush1.bf16.msra.mxu0 %v309
    %599 = vmatprep.subr.bf16.mxu0 0
    %600 = vmatpush1.bf16.msra.mxu0 %v310
    %601 = vmatprep.subr.bf16.mxu0 0
    %602 = vmatpush1.bf16.msra.mxu0 %v311
    %603 = vmatprep.subr.bf16.mxu0 0
    %604 = vmatpush1.bf16.msra.mxu0 %v312
    %605 = vmatprep.subr.bf16.mxu0 0
    %606 = vmatpush1.bf16.msra.mxu0 %v313
    %607 = vmatprep.subr.bf16.mxu0 0
    %608 = vmatpush1.bf16.msra.mxu0 %v314
    %609 = vmatprep.subr.bf16.mxu0 0
    %610 = vmatpush1.bf16.msra.mxu0 %v315
    %611 = vmatprep.subr.bf16.mxu0 0
    %612 = vmatpush1.bf16.msra.mxu0 %v316
    %613 = vmatprep.subr.bf16.mxu0 0
    %614 = vmatpush1.bf16.msra.mxu0 0
    %615 = vmatprep.subr.bf16.mxu0 0
    %616 = vmatpush1.bf16.msra.mxu0 0
    %617 = vmatprep.subr.bf16.mxu0 0
    %618 = vmatpush1.bf16.msra.mxu0 0
    %619 = vmatprep.subr.bf16.mxu0 0
    %620 = vmatpush1.bf16.msra.mxu0 0
    %621 = vmatprep.subr.bf16.mxu0 0
    %622 = vmatpush1.bf16.msra.mxu0 0
    %623 = vmatprep.subr.bf16.mxu0 0
    %624 = vmatpush1.bf16.msra.mxu0 0
    %625 = vmatprep.subr.bf16.mxu0 0
    %626 = vmatpush1.bf16.msra.mxu0 0
    %627 = vmatprep.subr.bf16.mxu0 0
    %628 = vmatpush1.bf16.msra.mxu0 0
    %629 = vmatprep.mubr.bf16.mxu0 0
    %630 = vmatmul.mubr.bf16.gmra.mrb[0].mxu0 %v596
    %v631 = vpop.f32.mrb[0].mxu0
    %v632 = vadd.f32 0.0, %v631
    %v633 = vpop.f32.mrb[0].mxu0
    %v634 = vpop.f32.mrb[0].mxu0
    %v635 = vpop.f32.mrb[0].mxu0
    %636 = vdwg.mxu0
    %v637 = vsub.f32 %v591, %v632
    %v638 = vmul.f32 %v637, %v637
    %v639 = vpack.c.bf16 %v638, %v638
    %640 = vmatprep.subr.bf16.mxu0 0
    %641 = vmatpush1.bf16.msra.mxu0 %v309
    %642 = vmatprep.subr.bf16.mxu0 0
    %643 = vmatpush1.bf16.msra.mxu0 %v310
    %644 = vmatprep.subr.bf16.mxu0 0
    %645 = vmatpush1.bf16.msra.mxu0 %v311
    %646 = vmatprep.subr.bf16.mxu0 0
    %647 = vmatpush1.bf16.msra.mxu0 %v312
    %648 = vmatprep.subr.bf16.mxu0 0
    %649 = vmatpush1.bf16.msra.mxu0 %v313
    %650 = vmatprep.subr.bf16.mxu0 0
    %651 = vmatpush1.bf16.msra.mxu0 %v314
    %652 = vmatprep.subr.bf16.mxu0 0
    %653 = vmatpush1.bf16.msra.mxu0 %v315
    %654 = vmatprep.subr.bf16.mxu0 0
    %655 = vmatpush1.bf16.msra.mxu0 %v316
    %656 = vmatprep.subr.bf16.mxu0 0
    %657 = vmatpush1.bf16.msra.mxu0 0
    %658 = vmatprep.subr.bf16.mxu0 0
    %659 = vmatpush1.bf16.msra.mxu0 0
    %660 = vmatprep.subr.bf16.mxu0 0
    %661 = vmatpush1.bf16.msra.mxu0 0
    %662 = vmatprep.subr.bf16.mxu0 0
    %663 = vmatpush1.bf16.msra.mxu0 0
    %664 = vmatprep.subr.bf16.mxu0 0
    %665 = vmatpush1.bf16.msra.mxu0 0
    %666 = vmatprep.subr.bf16.mxu0 0
    %667 = vmatpush1.bf16.msra.mxu0 0
    %668 = vmatprep.subr.bf16.mxu0 0
    %669 = vmatpush1.bf16.msra.mxu0 0
    %670 = vmatprep.subr.bf16.mxu0 0
    %671 = vmatpush1.bf16.msra.mxu0 0
    %672 = vmatprep.mubr.bf16.mxu0 0
    %673 = vmatmul.mubr.bf16.gmra.mrb[0].mxu0 %v639
    %v674 = vpop.f32.mrb[0].mxu0
    %v675 = vadd.f32 1e-05, %v674
    %v676 = vpop.f32.mrb[0].mxu0
    %v677 = vpop.f32.mrb[0].mxu0
    %v678 = vpop.f32.mrb[0].mxu0
    %679 = vdwg.mxu0
    %v680 = vrsqrt.pop %v675
    %v681 = vmul.f32 %v637, %v680
    %v682 = vlaneseq
    %v683 = vshrl.u32 %v682, 7
    %v684 = vsub.s32 6, %v683
    %v685 = vrot.slane %v124, %v684
    %v686 = vmul.f32 %v681, %v685
    %v687 = vlaneseq
    %v688 = vshrl.u32 %v687, 7
    %v689 = vsub.s32 7, %v688
    %v690 = vrot.slane %v124, %v689
    %v691 = vadd.f32 %v686, %v690
    %v692 = vadd.f32 %v691, %v268
    %v693 = vadd.f32 %v692, %v107
    %v694 = vpack.c.bf16 %v693, %v693
    %695 = vmatprep.subr.bf16.mxu0 0
    %696 = vmatpush1.bf16.msra.mxu0 %v309
    %697 = vmatprep.subr.bf16.mxu0 0
    %698 = vmatpush1.bf16.msra.mxu0 %v310
    %699 = vmatprep.subr.bf16.mxu0 0
    %700 = vmatpush1.bf16.msra.mxu0 %v311
    %701 = vmatprep.subr.bf16.mxu0 0
    %702 = vmatpush1.bf16.msra.mxu0 %v312
    %703 = vmatprep.subr.bf16.mxu0 0
    %704 = vmatpush1.bf16.msra.mxu0 %v313
    %705 = vmatprep.subr.bf16.mxu0 0
    %706 = vmatpush1.bf16.msra.mxu0 %v314
    %707 = vmatprep.subr.bf16.mxu0 0
    %708 = vmatpush1.bf16.msra.mxu0 %v315
    %709 = vmatprep.subr.bf16.mxu0 0
    %710 = vmatpush1.bf16.msra.mxu0 %v316
    %711 = vmatprep.subr.bf16.mxu0 0
    %712 = vmatpush1.bf16.msra.mxu0 0
    %713 = vmatprep.subr.bf16.mxu0 0
    %714 = vmatpush1.bf16.msra.mxu0 0
    %715 = vmatprep.subr.bf16.mxu0 0
    %716 = vmatpush1.bf16.msra.mxu0 0
    %717 = vmatprep.subr.bf16.mxu0 0
    %718 = vmatpush1.bf16.msra.mxu0 0
    %719 = vmatprep.subr.bf16.mxu0 0
    %720 = vmatpush1.bf16.msra.mxu0 0
    %721 = vmatprep.subr.bf16.mxu0 0
    %722 = vmatpush1.bf16.msra.mxu0 0
    %723 = vmatprep.subr.bf16.mxu0 0
    %724 = vmatpush1.bf16.msra.mxu0 0
    %725 = vmatprep.subr.bf16.mxu0 0
    %726 = vmatpush1.bf16.msra.mxu0 0
    %727 = vmatprep.mubr.bf16.mxu0 0
    %728 = vmatmul.mubr.bf16.gmra.mrb[0].mxu0 %v694
    %v729 = vpop.f32.mrb[0].mxu0
    %v730 = vadd.f32 0.0, %v729
    %v731 = vpop.f32.mrb[0].mxu0
    %v732 = vpop.f32.mrb[0].mxu0
    %v733 = vpop.f32.mrb[0].mxu0
    %734 = vdwg.mxu0
    %v735 = vsub.f32 %v693, %v730
    %v736 = vmul.f32 %v735, %v735
    %v737 = vpack.c.bf16 %v736, %v736
    %738 = vmatprep.subr.bf16.mxu0 0
    %739 = vmatpush1.bf16.msra.mxu0 %v309
    %740 = vmatprep.subr.bf16.mxu0 0
    %741 = vmatpush1.bf16.msra.mxu0 %v310
    %742 = vmatprep.subr.bf16.mxu0 0
    %743 = vmatpush1.bf16.msra.mxu0 %v311
    %744 = vmatprep.subr.bf16.mxu0 0
    %745 = vmatpush1.bf16.msra.mxu0 %v312
    %746 = vmatprep.subr.bf16.mxu0 0
    %747 = vmatpush1.bf16.msra.mxu0 %v313
    %748 = vmatprep.subr.bf16.mxu0 0
    %749 = vmatpush1.bf16.msra.mxu0 %v314
    %750 = vmatprep.subr.bf16.mxu0 0
    %751 = vmatpush1.bf16.msra.mxu0 %v315
    %752 = vmatprep.subr.bf16.mxu0 0
    %753 = vmatpush1.bf16.msra.mxu0 %v316
    %754 = vmatprep.subr.bf16.mxu0 0
    %755 = vmatpush1.bf16.msra.mxu0 0
    %756 = vmatprep.subr.bf16.mxu0 0
    %757 = vmatpush1.bf16.msra.mxu0 0
    %758 = vmatprep.subr.bf16.mxu0 0
    %759 = vmatpush1.bf16.msra.mxu0 0
    %760 = vmatprep.subr.bf16.mxu0 0
    %761 = vmatpush1.bf16.msra.mxu0 0
    %762 = vmatprep.subr.bf16.mxu0 0
    %763 = vmatpush1.bf16.msra.mxu0 0
    %764 = vmatprep.subr.bf16.mxu0 0
    %765 = vmatpush1.bf16.msra.mxu0 0
    %766 = vmatprep.subr.bf16.mxu0 0
    %767 = vmatpush1.bf16.msra.mxu0 0
    %768 = vmatprep.subr.bf16.mxu0 0
    %769 = vmatpush1.bf16.msra.mxu0 0
    %770 = vmatprep.mubr.bf16.mxu0 0
    %771 = vmatmul.mubr.bf16.gmra.mrb[0].mxu0 %v737
    %v772 = vpop.f32.mrb[0].mxu0
    %v773 = vadd.f32 1e-12, %v772
    %v774 = vpop.f32.mrb[0].mxu0
    %v775 = vpop.f32.mrb[0].mxu0
    %v776 = vpop.f32.mrb[0].mxu0
    %777 = vdwg.mxu0
    %v778 = vrsqrt.pop %v773
    %v779 = vmul.f32 %v735, %v778
    %v780 = vlaneseq
    %v781 = vshrl.u32 %v780, 7
    %v782 = vsub.s32 0, %v781
    %v783 = vrot.slane %v125, %v782
    %v784 = vmul.f32 %v779, %v783
    %v785 = vlaneseq
    %v786 = vshrl.u32 %v785, 7
    %v787 = vsub.s32 1, %v786
    %v788 = vrot.slane %v125, %v787
    %v789 = vadd.f32 %v784, %v788
    %790 = vst [vmem:[#allocation13] sm:$0xff] %v789
    // Predicated region
    $region54: #{tpu_custom_call.1} parent=1 // pred_check
      _
    $region55: #{tpu_custom_call.1} parent=1 // pred_check_branch
      %792 = sbr.rel (0) target = $region57
    $region56: #{tpu_custom_call.1} parent=1 // pred_region
      %s794 = ssub.s32 128, 128
      %795 = vsyncadd [#allocation4], %s794
      %s797 = sshll.u32 [#allocation13], 4
      %s798 = int_to_ptr.vmem [resolvable:$true] %s797
      %800 = dma.vmem_to_hbm [thread:$0]  %s798, 128, %s7, [#allocation4]
    $region57: #{tpu_custom_call.1} parent=1 // pred_fallthru
      _
    // Predicated region
    $region58: #{tpu_custom_call.1} parent=1 // pred_check
      _
    $region59: #{tpu_custom_call.1} parent=1 // pred_check_branch
      %802 = sbr.rel (0) target = $region61
    $region60: #{tpu_custom_call.1} parent=1 // pred_region
      %803 = dma.done [#allocation4], 128
    $region61: #{tpu_custom_call.1} parent=1 // pred_fallthru
      _
    %804 = vsyncpa [#allocation3], 1
    %805 = vsyncpa [#allocation6], 1
    %806 = vsyncpa [#allocation9], 1
    %807 = vsyncpa [#allocation12], 1
    %808 = vsyncpa [#allocation4], 1

</llo_original>
